<compile_context>
chip_gen: v6e
topology: v6e:2x2x1
jax: 0.10.0
libtpu: 0.0.40
codegen_flags: <defaults>
</compile_context>

<pallas_src>
import functools

import jax
import jax.numpy as jnp
from jax.experimental import pallas as pl
from jax.experimental.pallas import tpu as pltpu


# ----------------------------- helpers -------------------------------------


def _round_up(x, m):
    return ((x + m - 1) // m) * m


def _pick_tiles(B, D, C):
    # Lane-dense, MXU-aligned tiles, clamped for small problems.
    # Budget (bf16 inputs, f32 acc, double buffered) stays well under the
    # default scoped-VMEM limit on v5e/v6e/v7x.
    tm = min(256, _round_up(B, 16))
    tk = min(512, _round_up(D, 128))
    tn = min(512, _round_up(C, 128))
    return tm, tk, tn


def _pad2(a, rows, cols):
    r, c = a.shape
    if r == rows and c == cols:
        return a
    return jnp.pad(a, ((0, rows - r), (0, cols - c)))


# ----------------------------- kernels -------------------------------------


def _linear_kernel(x_ref, w_ref, b_ref, o_ref, acc_ref):
    # x_ref: (tm, tk), w_ref: (tk, tn), b_ref: (1, tn) f32,
    # o_ref: (tm, tn) f32, acc_ref: (tm, tn) f32 scratch.
    k = pl.program_id(2)

    @pl.when(k == 0)
    def _init():
        # Fold the bias add into the accumulator init (one broadcast, once).
        acc_ref[...] = jnp.broadcast_to(b_ref[...], acc_ref.shape)

    acc_ref[...] += jnp.dot(x_ref[...], w_ref[...],
                            preferred_element_type=jnp.float32)

    @pl.when(k == pl.num_programs(2) - 1)
    def _finalize():
        o_ref[...] = acc_ref[...].astype(o_ref.dtype)


def _cosine_kernel(x_ref, w_ref, xinv_ref, winv_ref, o_ref, acc_ref):
    # x_ref: (tm, tk), w_ref: (tk, tn), xinv_ref: (tm, 1) f32,
    # winv_ref: (1, tn) f32 (scale folded in), o_ref/acc_ref: (tm, tn) f32.
    k = pl.program_id(2)

    @pl.when(k == 0)
    def _init():
        acc_ref[...] = jnp.zeros_like(acc_ref)

    acc_ref[...] += jnp.dot(x_ref[...], w_ref[...],
                            preferred_element_type=jnp.float32)

    @pl.when(k == pl.num_programs(2) - 1)
    def _finalize():
        # Post-scale the raw matmul: mathematically identical to normalizing
        # x rows / w columns before the matmul, but O(B*C) instead of O(D*C).
        o_ref[...] = (acc_ref[...] * xinv_ref[...] * winv_ref[...]).astype(
            o_ref.dtype)


# ----------------------------- wrappers ------------------------------------


@functools.partial(jax.jit, static_argnames=("compute_dtype",))
def linear_classifier_pallas(x, w, b, *, compute_dtype=jnp.bfloat16):
    """x: [B, D] f32, w: [D, C] f32, b: [C] f32 -> [B, C] f32."""
    B, D = x.shape
    C = w.shape[1]
    tm, tk, tn = _pick_tiles(B, D, C)
    Bp, Dp, Cp = _round_up(B, tm), _round_up(D, tk), _round_up(C, tn)

    xp = _pad2(x, Bp, Dp).astype(compute_dtype)
    wp = _pad2(w, Dp, Cp).astype(compute_dtype)
    bp = _pad2(b.reshape(1, C).astype(jnp.float32), 1, Cp)

    itemsize = jnp.dtype(compute_dtype).itemsize
    cost = pl.CostEstimate(
        flops=2 * B * D * C,
        transcendentals=0,
        bytes_accessed=B * D * itemsize + D * C * itemsize + C * 4 + B * C * 4)

    out = pl.pallas_call(
        _linear_kernel,
        out_shape=jax.ShapeDtypeStruct((Bp, Cp), jnp.float32),
        grid=(Bp // tm, Cp // tn, Dp // tk),
        in_specs=[
            pl.BlockSpec((tm, tk), lambda i, j, k: (i, k)),
            pl.BlockSpec((tk, tn), lambda i, j, k: (k, j)),
            pl.BlockSpec((1, tn), lambda i, j, k: (0, j)),
        ],
        out_specs=pl.BlockSpec((tm, tn), lambda i, j, k: (i, j)),
        scratch_shapes=[pltpu.VMEM((tm, tn), jnp.float32)],
        compiler_params=pltpu.CompilerParams(
            dimension_semantics=("parallel", "parallel", "arbitrary")),
        cost_estimate=cost,
    )(xp, wp, bp)
    return out[:B, :C]


@functools.partial(jax.jit, static_argnames=("compute_dtype",))
def cosine_classifier_pallas(x, w, scale, *, compute_dtype=jnp.bfloat16):
    """x: [B, D] f32, w: [D, C] f32, scale: scalar f32 -> [B, C] f32."""
    B, D = x.shape
    C = w.shape[1]
    tm, tk, tn = _pick_tiles(B, D, C)
    Bp, Dp, Cp = _round_up(B, tm), _round_up(D, tk), _round_up(C, tn)

    eps = jnp.float32(1e-12)
    scale = jnp.asarray(scale, jnp.float32).reshape(())

    # Norms computed from the original f32 tensors (keeps F.normalize's
    # max(||.||, eps) clamp semantics and full precision).
    x_norm = jnp.sqrt(jnp.sum(x * x, axis=1, keepdims=True))          # (B, 1)
    x_inv = 1.0 / jnp.maximum(x_norm, eps)
    w_norm = jnp.sqrt(jnp.sum(w * w, axis=0, keepdims=True))          # (1, C)
    w_inv = scale / jnp.maximum(w_norm, eps)                          # scale folded in

    xp = _pad2(x, Bp, Dp).astype(compute_dtype)
    wp = _pad2(w, Dp, Cp).astype(compute_dtype)
    xinv_p = _pad2(x_inv, Bp, 1)
    winv_p = _pad2(w_inv, 1, Cp)

    itemsize = jnp.dtype(compute_dtype).itemsize
    cost = pl.CostEstimate(
        flops=2 * B * D * C + 2 * B * C,
        transcendentals=0,
        bytes_accessed=(B * D * itemsize + D * C * itemsize
                        + (B + C) * 4 + B * C * 4))

    out = pl.pallas_call(
        _cosine_kernel,
        out_shape=jax.ShapeDtypeStruct((Bp, Cp), jnp.float32),
        grid=(Bp // tm, Cp // tn, Dp // tk),
        in_specs=[
            pl.BlockSpec((tm, tk), lambda i, j, k: (i, k)),
            pl.BlockSpec((tk, tn), lambda i, j, k: (k, j)),
            pl.BlockSpec((tm, 1), lambda i, j, k: (i, 0)),
            pl.BlockSpec((1, tn), lambda i, j, k: (0, j)),
        ],
        out_specs=pl.BlockSpec((tm, tn), lambda i, j, k: (i, j)),
        scratch_shapes=[pltpu.VMEM((tm, tn), jnp.float32)],
        compiler_params=pltpu.CompilerParams(
            dimension_semantics=("parallel", "parallel", "arbitrary")),
        cost_estimate=cost,
    )(xp, wp, xinv_p, winv_p)
    return out[:B, :C]


# ----------------------------- Classifier ----------------------------------


class Classifier:
    """JAX/Pallas port of models/classifier.py::Classifier."""

    def __init__(self, in_dim, num_classes, bias=False, scale=1.0,
                 learn_scale=False, cls_type="linear", key=None,
                 compute_dtype=jnp.bfloat16):
        self.in_dim = in_dim
        self.num_classes = num_classes
        self.classifier_type = cls_type
        self.compute_dtype = compute_dtype
        if key is None:
            key = jax.random.PRNGKey(0)
        kw, kb = jax.random.split(key)

        if cls_type == "linear":
            # nn.Linear init: U(-1/sqrt(in_dim), 1/sqrt(in_dim)).
            bound = 1.0 / jnp.sqrt(jnp.float32(in_dim))
            # stored as [in_dim, num_classes] (transpose of PyTorch's [out, in])
            self.weight = jax.random.uniform(
                kw, (in_dim, num_classes), jnp.float32, -bound, bound)
            self.bias = jax.random.uniform(
                kb, (num_classes,), jnp.float32, -bound, bound)
            self.scale_cls = None
        elif cls_type == "cosine":
            # CosineClassifier init: N(0, sqrt(2/num_channels)); stored as [D, C].
            std = jnp.sqrt(jnp.float32(2.0 / in_dim))
            self.weight = jax.random.normal(
                kw, (in_dim, num_classes), jnp.float32) * std
            self.bias = (jnp.zeros((num_classes,), jnp.float32) if bias else None)
            # TODO(synk): optional cosine bias-add (bias=True) is not fused into
            # the kernel; default CosineClassifier uses bias=False, matching this.
            self.scale_cls = jnp.asarray(scale, jnp.float32)
        else:
            raise ValueError(
                "Not implemented / recognized classifier type {}".format(cls_type))

    def __call__(self, features):
        if self.classifier_type == "linear":
            return linear_classifier_pallas(
                features, self.weight, self.bias,
                compute_dtype=self.compute_dtype)
        else:
            return cosine_classifier_pallas(
                features, self.weight, self.scale_cls,
                compute_dtype=self.compute_dtype)


# ----------------------------- main ----------------------------------------


if __name__ == "__main__":
    key = jax.random.PRNGKey(0)
    k_x, k_lin, k_cos = jax.random.split(key, 3)

    B, D, C = 8, 32, 16
    x = jax.random.normal(k_x, (B, D), jnp.float32)

    # ---- linear classifier (default cls_type), bf16 compute path ----
    clf_lin = Classifier(in_dim=D, num_classes=C, cls_type="linear", key=k_lin)
    scores_lin = clf_lin(x)
    jax.block_until_ready(scores_lin)
    ref_lin = x @ clf_lin.weight + clf_lin.bias[None, :]
    assert scores_lin.shape == (B, C)
    assert jnp.allclose(scores_lin, ref_lin, atol=2e-2, rtol=2e-2)

    # exact check with the f32 compute path
    scores_lin_f32 = linear_classifier_pallas(
        x, clf_lin.weight, clf_lin.bias, compute_dtype=jnp.float32)
    jax.block_until_ready(scores_lin_f32)
    assert jnp.allclose(scores_lin_f32, ref_lin, atol=1e-5, rtol=1e-5)

    # ---- cosine classifier, bf16 compute path ----
    clf_cos = Classifier(in_dim=D, num_classes=C, cls_type="cosine",
                         scale=10.0, key=k_cos)
    scores_cos = clf_cos(x)
    jax.block_until_ready(scores_cos)
    xn = x / jnp.maximum(jnp.linalg.norm(x, axis=1, keepdims=True), 1e-12)
    wn = clf_cos.weight / jnp.maximum(
        jnp.linalg.norm(clf_cos.weight, axis=0, keepdims=True), 1e-12)
    ref_cos = (xn @ wn) * 10.0
    assert scores_cos.shape == (B, C)
    assert jnp.allclose(scores_cos, ref_cos, atol=1e-1, rtol=5e-2)

    # exact check with the f32 compute path
    scores_cos_f32 = cosine_classifier_pallas(
        x, clf_cos.weight, clf_cos.scale_cls, compute_dtype=jnp.float32)
    jax.block_until_ready(scores_cos_f32)
    assert jnp.allclose(scores_cos_f32, ref_cos, atol=1e-5, rtol=1e-5)

    print("KERNEL_OK")
</pallas_src>

<mosaic_0001>
module attributes {stable_mosaic.version = 11 : i64} {
  func.func @_linear_kernel(%arg0: i32, %arg1: i32, %arg2: i32, %arg3: memref<16x128xbf16, #tpu.memory_space<vmem>>, %arg4: memref<128x128xbf16, #tpu.memory_space<vmem>>, %arg5: memref<1x128xf32, #tpu.memory_space<vmem>>, %arg6: memref<16x128xf32, #tpu.memory_space<vmem>>, %arg7: memref<16x128xf32, #tpu.memory_space<vmem>>) attributes {dimension_semantics = [#tpu.dimension_semantics<parallel>, #tpu.dimension_semantics<parallel>, #tpu.dimension_semantics<arbitrary>], iteration_bounds = array<i64: 1, 1, 1>, scalar_prefetch = 0 : i64, scratch_operands = 1 : i64, tpu.core_type = #tpu.core_type<tc>, window_params = [{transform_indices = @transform_0, window_bounds = array<i64: 16, 128>}, {transform_indices = @transform_1, window_bounds = array<i64: 128, 128>}, {transform_indices = @transform_2, window_bounds = array<i64: 1, 128>}, {transform_indices = @transform_3, window_bounds = array<i64: 16, 128>}]} {
    %c0_i32 = arith.constant 0 : i32
    %0 = arith.cmpi eq, %arg2, %c0_i32 : i32
    %1 = arith.extui %0 : i1 to i32
    %c0_i32_0 = arith.constant 0 : i32
    %2 = arith.cmpi ne, %1, %c0_i32_0 : i32
    scf.if %2 {
      %c0_10 = arith.constant 0 : index
      %c0_11 = arith.constant 0 : index
      %12 = vector.load %arg5[%c0_10, %c0_11] : memref<1x128xf32, #tpu.memory_space<vmem>>, vector<1x128xf32>
      %13 = vector.shape_cast %12 : vector<1x128xf32> to vector<1x128xf32>
      %14 = vector.broadcast %13 : vector<1x128xf32> to vector<16x128xf32>
      %c0_12 = arith.constant 0 : index
      %c0_13 = arith.constant 0 : index
      %15 = vector.load %arg7[%c0_12, %c0_13] : memref<16x128xf32, #tpu.memory_space<vmem>>, vector<16x128xf32>
      tpu.vector_store %arg7[%c0_12, %c0_13], %14 {strides = array<i32>} : memref<16x128xf32, #tpu.memory_space<vmem>>, vector<16x128xf32>,
    } else {
    }
    %c0 = arith.constant 0 : index
    %c0_1 = arith.constant 0 : index
    %3 = vector.load %arg7[%c0, %c0_1] : memref<16x128xf32, #tpu.memory_space<vmem>>, vector<16x128xf32>
    %c0_2 = arith.constant 0 : index
    %c0_3 = arith.constant 0 : index
    %4 = vector.load %arg3[%c0_2, %c0_3] : memref<16x128xbf16, #tpu.memory_space<vmem>>, vector<16x128xbf16>
    %c0_4 = arith.constant 0 : index
    %c0_5 = arith.constant 0 : index
    %5 = vector.load %arg4[%c0_4, %c0_5] : memref<128x128xbf16, #tpu.memory_space<vmem>>, vector<128x128xbf16>
    %cst = arith.constant dense<0.000000e+00> : vector<16x128xf32>
    %6 = tpu.matmul %4, %5, %cst {dimension_numbers = #tpu.dot_dimension_numbers<[1], [0], [0], [1], [0, 0, 1, 1], [], []>} : vector<16x128xbf16>, vector<128x128xbf16>, vector<16x128xf32> -> vector<16x128xf32>
    %7 = arith.addf %3, %6 : vector<16x128xf32>
    %c0_6 = arith.constant 0 : index
    %c0_7 = arith.constant 0 : index
    %8 = vector.load %arg7[%c0_6, %c0_7] : memref<16x128xf32, #tpu.memory_space<vmem>>, vector<16x128xf32>
    tpu.vector_store %arg7[%c0_6, %c0_7], %7 {strides = array<i32>} : memref<16x128xf32, #tpu.memory_space<vmem>>, vector<16x128xf32>,
    %c0_i32_8 = arith.constant 0 : i32
    %9 = arith.cmpi eq, %arg2, %c0_i32_8 : i32
    %10 = arith.extui %9 : i1 to i32
    %c0_i32_9 = arith.constant 0 : i32
    %11 = arith.cmpi ne, %10, %c0_i32_9 : i32
    scf.if %11 {
      %c0_10 = arith.constant 0 : index
      %c0_11 = arith.constant 0 : index
      %12 = vector.load %arg7[%c0_10, %c0_11] : memref<16x128xf32, #tpu.memory_space<vmem>>, vector<16x128xf32>
      %c0_12 = arith.constant 0 : index
      %c0_13 = arith.constant 0 : index
      %13 = vector.load %arg6[%c0_12, %c0_13] : memref<16x128xf32, #tpu.memory_space<vmem>>, vector<16x128xf32>
      tpu.vector_store %arg6[%c0_12, %c0_13], %12 {strides = array<i32>} : memref<16x128xf32, #tpu.memory_space<vmem>>, vector<16x128xf32>,
    } else {
    }
    return
  }
  func.func @transform_0(%arg0: i32, %arg1: i32, %arg2: i32) -> (i32, i32) {
    %c0_i32 = arith.constant 0 : i32
    return %arg0, %arg2 : i32, i32
  }
  func.func @transform_1(%arg0: i32, %arg1: i32, %arg2: i32) -> (i32, i32) {
    %c0_i32 = arith.constant 0 : i32
    return %arg2, %arg1 : i32, i32
  }
  func.func @transform_2(%arg0: i32, %arg1: i32, %arg2: i32) -> (i32, i32) {
    %c0_i32 = arith.constant 0 : i32
    %c0_i32_0 = arith.constant 0 : i32
    return %c0_i32, %arg1 : i32, i32
  }
  func.func @transform_3(%arg0: i32, %arg1: i32, %arg2: i32) -> (i32, i32) {
    %c0_i32 = arith.constant 0 : i32
    return %arg0, %arg1 : i32, i32
  }
}

</mosaic_0001>

<llo_original>
// kernel: linear_classifier_pallas.1
$region0: #{linear_classifier_pallas.1}
  #allocation0 [shape = 'u32[]', space=smem, size = 0x4, offset = 0x4, fixed_abs, tag = 'smem constant byte address 0x4 - core index']
  #allocation1 [shape = 'u32[144,128]{1,0:T(1,128)}', space=vmem, size = 0x12000, scoped, tag = 'internal scratch']
  #allocation2 [shape = 'f32[16,128]{1,0:T(8,128)}', space=vmem, size = 0x2000, scoped, tag = 'scratch operand']
  %s0 = inlined_call_operand.vmem [shape: bf16[16,128], index: 0, kind: input, shape index: {}]
  %s1 = inlined_call_operand.vmem [shape: bf16[128,128], index: 1, kind: input, shape index: {}]
  %s2 = inlined_call_operand.vmem [shape: f32[1,128], index: 2, kind: input, shape index: {}]
  %s3 = inlined_call_operand.vmem [shape: f32[16,128], index: 3, kind: output, shape index: {}]
  %s4 = sld [smem:[#allocation0]]
  $region30: #{linear_classifier_pallas.1} parent=0
    _
  %s6 = ssub.s32 1, %s4
  %s7 = scalar_select 0, %s6, %s4
  // Predicated region
  $region2: #{linear_classifier_pallas.1} parent=0 // pred_check
    _
  $region3: #{linear_classifier_pallas.1} parent=0 // pred_check_branch
    %9 = sbr.rel (0) target = $region5
  $region4: #{linear_classifier_pallas.1} parent=0 // pred_region
    _
  $region5: #{linear_classifier_pallas.1} parent=0 // pred_fallthru
    _
  // Predicated region
  $region6: #{linear_classifier_pallas.1} parent=0 // pred_check
    _
  $region7: #{linear_classifier_pallas.1} parent=0 // pred_check_branch
    %11 = sbr.rel (0) target = $region9
  $region8: #{linear_classifier_pallas.1} parent=0 // pred_region
    _
  $region9: #{linear_classifier_pallas.1} parent=0 // pred_fallthru
    _
  // Predicated region
  $region10: #{linear_classifier_pallas.1} parent=0 // pred_check
    _
  $region11: #{linear_classifier_pallas.1} parent=0 // pred_check_branch
    %13 = sbr.rel (0) target = $region13
  $region12: #{linear_classifier_pallas.1} parent=0 // pred_region
    _
  $region13: #{linear_classifier_pallas.1} parent=0 // pred_fallthru
    _
  %p15 = scmp.eq.s32.totalorder 0, 0
  // Predicated region
  $region14: #{linear_classifier_pallas.1} parent=0 // pred_check
    %p16 = pneg %p15
  $region15: #{linear_classifier_pallas.1} parent=0 // pred_check_branch
    %18 = sbr.rel (%p16) target = $region17
  $region16: #{linear_classifier_pallas.1} parent=0 // pred_region
    %v19 = vld [vmem:[%s2] sm:$0x1]
    %v21 = vlaneseq
    %v22 = vshrl.u32 %v21, 7
    %v23 = vsub.s32 0, %v22
    %v24 = vrot.slane %v19, %v23
    %26 = vst [vmem:[#allocation2] sm:$0xff] %v24
    %27 = vst [vmem:[#allocation2 + $0x8] sm:$0xff] %v24
  $region17: #{linear_classifier_pallas.1} parent=0 // pred_fallthru
    _
  %v28 = vld [vmem:[#allocation2] sm:$0xff]
  %v29 = vld [vmem:[#allocation2 + $0x8] sm:$0xff]
  %v30 = vld [vmem:[%s0] sm:$0xf]
  %v31 = vld [vmem:[%s0 + $0x4] sm:$0xf]
  %v32 = vld [vmem:[%s1] sm:$0xf]
  %v33 = vld [vmem:[%s1 + $0x4] sm:$0xf]
  %v34 = vld [vmem:[%s1 + $0x8] sm:$0xf]
  %v35 = vld [vmem:[%s1 + $0xc] sm:$0xf]
  %v36 = vld [vmem:[%s1 + $0x10] sm:$0xf]
  %v37 = vld [vmem:[%s1 + $0x14] sm:$0xf]
  %v38 = vld [vmem:[%s1 + $0x18] sm:$0xf]
  %v39 = vld [vmem:[%s1 + $0x1c] sm:$0xf]
  %v40 = vld [vmem:[%s1 + $0x20] sm:$0xf]
  %v41 = vld [vmem:[%s1 + $0x24] sm:$0xf]
  %v42 = vld [vmem:[%s1 + $0x28] sm:$0xf]
  %v43 = vld [vmem:[%s1 + $0x2c] sm:$0xf]
  %v44 = vld [vmem:[%s1 + $0x30] sm:$0xf]
  %v45 = vld [vmem:[%s1 + $0x34] sm:$0xf]
  %v46 = vld [vmem:[%s1 + $0x38] sm:$0xf]
  %v47 = vld [vmem:[%s1 + $0x3c] sm:$0xf]
  %v50 = vunpack.c.l.b16 %v30
  %v51 = vunpack.c.l.b16 %v31
  %v52 = vpack.c.b16 %v51, %v50
  %v70 = vunpack.c.l.b16 %v32
  %v71 = vunpack.c.l.b16 %v33
  %v72 = vunpack.c.l.b16 %v34
  %v73 = vunpack.c.l.b16 %v35
  %v74 = vunpack.c.l.b16 %v36
  %v75 = vunpack.c.l.b16 %v37
  %v76 = vunpack.c.l.b16 %v38
  %v77 = vunpack.c.l.b16 %v39
  %v78 = vunpack.c.l.b16 %v40
  %v79 = vunpack.c.l.b16 %v41
  %v80 = vunpack.c.l.b16 %v42
  %v81 = vunpack.c.l.b16 %v43
  %v82 = vunpack.c.l.b16 %v44
  %v83 = vunpack.c.l.b16 %v45
  %v84 = vunpack.c.l.b16 %v46
  %v85 = vunpack.c.l.b16 %v47
  %v86 = vpack.c.b16 %v71, %v70
  %v87 = vpack.c.b16 %v73, %v72
  %v88 = vpack.c.b16 %v75, %v74
  %v89 = vpack.c.b16 %v77, %v76
  %v90 = vpack.c.b16 %v79, %v78
  %v91 = vpack.c.b16 %v81, %v80
  %v92 = vpack.c.b16 %v83, %v82
  %v93 = vpack.c.b16 %v85, %v84
  %102 = vmatprep.subr.bf16.mxu0 0
  %103 = vmatpush1.bf16.msra.mxu0 %v93
  %104 = vmatprep.subr.bf16.mxu0 0
  %105 = vmatpush1.bf16.msra.mxu0 %v92
  %106 = vmatprep.subr.bf16.mxu0 0
  %107 = vmatpush1.bf16.msra.mxu0 %v91
  %108 = vmatprep.subr.bf16.mxu0 0
  %109 = vmatpush1.bf16.msra.mxu0 %v90
  %110 = vmatprep.subr.bf16.mxu0 0
  %111 = vmatpush1.bf16.msra.mxu0 %v89
  %112 = vmatprep.subr.bf16.mxu0 0
  %113 = vmatpush1.bf16.msra.mxu0 %v88
  %114 = vmatprep.subr.bf16.mxu0 0
  %115 = vmatpush1.bf16.msra.mxu0 %v87
  %116 = vmatprep.subr.bf16.mxu0 0
  %117 = vmatpush1.bf16.msra.mxu0 %v86
  %118 = vmatprep.subr.bf16.mxu0 0
  %119 = vmatpush2.bf16.msra.mxu0 0
  %120 = vmatprep.subr.bf16.mxu0 0
  %121 = vmatpush2.bf16.msra.mxu0 0
  %122 = vmatprep.subr.bf16.mxu0 0
  %123 = vmatpush2.bf16.msra.mxu0 0
  %124 = vmatprep.subr.bf16.mxu0 0
  %125 = vmatpush2.bf16.msra.mxu0 0
  %126 = vmatprep.subr.bf16.mxu0 0
  %127 = vmatpush2.bf16.msra.mxu0 0
  %128 = vmatprep.subr.bf16.mxu0 0
  %129 = vmatpush2.bf16.msra.mxu0 0
  %130 = vmatprep.subr.bf16.mxu0 0
  %131 = vmatpush2.bf16.msra.mxu0 0
  %132 = vmatprep.subr.bf16.mxu0 0
  %133 = vmatpush2.bf16.msra.mxu0 0
  %134 = vmatprep.mubr.bf16.mxu0 0
  %135 = vmatmul.mubr.bf16.gmra.mxu0 %v52
  %v136 = vpop.f32.mrf.mxu0
  %v137 = vadd.f32 0.0, %v136
  %v138 = vpop.f32.mrf.mxu0
  %v139 = vpop.f32.mrf.mxu0
  %v140 = vadd.f32 0.0, %v139
  %v141 = vpop.f32.mrf.mxu0
  %142 = vdwg.mxu0
  %v143 = vadd.f32 %v28, %v137
  %v144 = vadd.f32 %v29, %v140
  %145 = vst [vmem:[#allocation2] sm:$0xff] %v143
  %146 = vst [vmem:[#allocation2 + $0x8] sm:$0xff] %v144
  // Predicated region
  $region18: #{linear_classifier_pallas.1} parent=0 // pred_check
    %p147 = pneg %p15
  $region19: #{linear_classifier_pallas.1} parent=0 // pred_check_branch
    %149 = sbr.rel (%p147) target = $region21
  $region20: #{linear_classifier_pallas.1} parent=0 // pred_region
    %v150 = vld [vmem:[#allocation2] sm:$0xff]
    %v151 = vld [vmem:[#allocation2 + $0x8] sm:$0xff]
    %152 = vst [vmem:[%s3] sm:$0xff] %v150
    %153 = vst [vmem:[%s3 + $0x8] sm:$0xff] %v151
  $region21: #{linear_classifier_pallas.1} parent=0 // pred_fallthru
    _
  // Predicated region
  $region22: #{linear_classifier_pallas.1} parent=0 // pred_check
    _
  $region23: #{linear_classifier_pallas.1} parent=0 // pred_check_branch
    %155 = sbr.rel (0) target = $region25
  $region24: #{linear_classifier_pallas.1} parent=0 // pred_region
    _
  $region25: #{linear_classifier_pallas.1} parent=0 // pred_fallthru
    _
  // Predicated region
  $region26: #{linear_classifier_pallas.1} parent=0 // pred_check
    _
  $region27: #{linear_classifier_pallas.1} parent=0 // pred_check_branch
    %157 = sbr.rel (0) target = $region29
  $region28: #{linear_classifier_pallas.1} parent=0 // pred_region
    _
  $region29: #{linear_classifier_pallas.1} parent=0 // pred_fallthru
    _

</llo_original>
